<compile_context>
chip_gen: v7x
topology: tpu7x:2x2x1
jax: 0.10.0
libtpu: 0.0.40
codegen_flags: <defaults>
</compile_context>

<pallas_src>
import numpy as np
import jax
import jax.numpy as jnp
from jax.experimental import pallas as pl
from jax.experimental.pallas import tpu as pltpu


# --------------------------------------------------------------------------- #
# Host-side helpers (numpy; run at trace time, produce tiny constants)        #
# --------------------------------------------------------------------------- #
def _build_pe_table(max_len: int, embedding_dim: int) -> np.ndarray:
    """Reference sin/cos table [max_len, E] (odd-E safe). Used only for checking."""
    position = np.arange(max_len, dtype=np.float64)[:, None]
    div_term = np.exp(
        np.arange(0, embedding_dim, 2, dtype=np.float64)
        * (-np.log(10000.0) / embedding_dim)
    )
    pe = np.zeros((max_len, embedding_dim), dtype=np.float64)
    pe[:, 0::2] = np.sin(position * div_term)
    pe[:, 1::2] = np.cos(position * div_term[: embedding_dim // 2])  # odd-E fix
    return pe.astype(np.float32)


def _choose_flat_layout(S: int, B: int, E: int) -> tuple[int, int, int]:
    """Pick (k, R, LANE): view x[S,B,E] as [R, LANE], LANE = k*B*E, R = S // k.

    Prefer a lane-dense trailing dim (multiple of 128, ideally >=512) by packing
    k sequence steps per flat row, provided S divides evenly and enough rows
    remain for a multi-step, sublane-full grid.
    """
    row = B * E
    k = 1
    if row % 128 != 0:
        for lane_target in (1024, 512, 256, 128):
            if lane_target % row == 0:
                cand = lane_target // row
                if S % cand == 0 and S // cand >= 32:
                    k = cand
                    break
    return k, S // k, k * row


def _pe_row_constants(B: int, E: int, k: int) -> tuple[np.ndarray, np.ndarray]:
    """Per-column constants for the flat [R, k*B*E] view.

    pe[r, c] = sin(r * freq[c] + bias[c]), where for column c:
      e        = c % E               (embedding index)
      s_offset = c // (B*E)          (sequence offset inside the packed row)
      inv_freq = exp(-2*(e//2) * ln(10000)/E)   == PyTorch div_term[e//2]
      phase    = 0 (e even -> sin) or pi/2 (e odd -> cos)
      freq[c]  = k * inv_freq
      bias[c]  = s_offset * inv_freq + phase
    """
    lane = k * B * E
    c = np.arange(lane)
    e = c % E
    s_off = (c // (B * E)).astype(np.float64)
    inv_freq = np.exp(-(2.0 * (e // 2)) * (np.log(10000.0) / E))
    phase = np.where(e % 2 == 0, 0.0, np.pi / 2.0)
    freq_row = (k * inv_freq).astype(np.float32)[None, :]
    bias_row = (s_off * inv_freq + phase).astype(np.float32)[None, :]
    return freq_row, bias_row


def _vmem_capacity_bytes() -> int:
    try:
        cap = getattr(pltpu.get_tpu_info(), "vmem_capacity_bytes", None)
        if cap:
            return int(cap)
    except Exception:
        pass
    return 64 << 20  # conservative: v7x physical VMEM per TensorCore


def _sublane_multiple(itemsize: int) -> int:
    # f32 -> 8, bf16 -> 16, int8/fp8 -> 32 (sub-32-bit dtypes pack along sublanes)
    return max(8, 32 // max(itemsize, 1))


def _choose_row_tile(R: int, lane: int, itemsize: int, tile_budget_bytes: int) -> int:
    """Rows per grid step: big enough to amortize per-step overhead, small enough
    to keep >= ~8 grid steps (pipelining + both v7x TensorCores) and to fit the
    per-generation VMEM budget with double buffering."""
    sub = _sublane_multiple(itemsize)
    if R <= sub:
        return R
    row_bytes = lane * itemsize
    by_budget = max(sub, (tile_budget_bytes // max(row_bytes, 1)) // sub * sub)
    by_steps = max(sub, pl.cdiv(pl.cdiv(R, 8), sub) * sub)  # aim for ~8 grid steps
    return min(R, by_budget, by_steps)


# --------------------------------------------------------------------------- #
# Kernel                                                                      #
# --------------------------------------------------------------------------- #
def _add_pe_kernel(x_ref, freq_ref, bias_ref, o_ref):
    # x_ref   : (TR, LANE) tile of the flat [R, LANE] activation view
    # freq_ref: (1, LANE)  per-column k*inv_freq      (resident, sublane broadcast)
    # bias_ref: (1, LANE)  per-column offset + phase  (phase pi/2 turns sin -> cos)
    tr, lane = x_ref.shape
    row0 = pl.program_id(0) * tr
    rows = row0 + jax.lax.broadcasted_iota(jnp.int32, (tr, lane), 0)
    angle = rows.astype(jnp.float32) * freq_ref[...] + bias_ref[...]
    pe = jnp.sin(angle)  # EUP slot is otherwise idle in this mem-bound kernel
    o_ref[...] = (x_ref[...].astype(jnp.float32) + pe).astype(o_ref.dtype)


# --------------------------------------------------------------------------- #
# Wrapper                                                                     #
# --------------------------------------------------------------------------- #
def positional_encoding_forward(x: jax.Array) -> jax.Array:
    """x: [S, B, E]  ->  x + pe[:S] broadcast over batch (dropout = identity)."""
    S, B, E = x.shape
    itemsize = x.dtype.itemsize

    k, R, LANE = _choose_flat_layout(S, B, E)
    x_flat = x.reshape(R, LANE)  # contiguous -> free reshape

    freq_np, bias_np = _pe_row_constants(B, E, k)
    freq_row = jnp.asarray(freq_np)
    bias_row = jnp.asarray(bias_np)

    vmem_cap = _vmem_capacity_bytes()
    # x-tile budget ~ cap/16: 4 MiB on v7x (64 MiB), 8 MiB on v5e/v6e (128 MiB).
    # Total footprint ~ 2x(in tile) + 2x(out tile) + tiny const rows stays well
    # under the scoped limit on every generation.
    tile_budget = max(2 << 20, vmem_cap // 16)
    TR = _choose_row_tile(R, LANE, itemsize, tile_budget)
    grid = (pl.cdiv(R, TR),)

    out_flat = pl.pallas_call(
        _add_pe_kernel,
        out_shape=jax.ShapeDtypeStruct((R, LANE), x.dtype),
        grid=grid,
        in_specs=[
            pl.BlockSpec((TR, LANE), lambda i: (i, 0)),  # activation tile, streams over rows
            pl.BlockSpec((1, LANE), lambda i: (0, 0)),   # freq row (constant block)
            pl.BlockSpec((1, LANE), lambda i: (0, 0)),   # bias row (constant block)
        ],
        out_specs=pl.BlockSpec((TR, LANE), lambda i: (i, 0)),
        input_output_aliases={0: 0},  # in-place add on the flat view
        compiler_params=pltpu.CompilerParams(
            dimension_semantics=("parallel",),  # lets v7x split the grid over 2 TCs
            vmem_limit_bytes=min(64 << 20, max(32 << 20, vmem_cap // 2)),
        ),
    )(x_flat, freq_row, bias_row)

    return out_flat.reshape(S, B, E)


# --------------------------------------------------------------------------- #
# Demo / self-check                                                           #
# --------------------------------------------------------------------------- #
if __name__ == "__main__":
    sequence_length = 8
    batch = 2
    embedding_dim = 32
    max_len = 5000

    key = jax.random.PRNGKey(0)
    # x layout: [seq_len, batch, embedding_dim]
    x = jax.random.normal(
        key, (sequence_length, batch, embedding_dim), dtype=jnp.float32
    )

    # Reference, computed on host BEFORE the kernel runs (the pallas_call donates
    # its first operand, so we never rely on device buffers afterwards).
    pe_np = _build_pe_table(max_len, embedding_dim)
    ref = np.asarray(x) + pe_np[:sequence_length][:, None, :]

    fwd = jax.jit(positional_encoding_forward)
    out = jax.block_until_ready(fwd(x))

    np.testing.assert_allclose(np.asarray(out), ref, rtol=1e-5, atol=1e-5)
    print("KERNEL_OK")
</pallas_src>

<mosaic_0001>
module attributes {stable_mosaic.version = 11 : i64} {
  func.func @_add_pe_kernel(%arg0: i32, %arg1: memref<8x64xf32, #tpu.memory_space<vmem>>, %arg2: memref<1x64xf32, #tpu.memory_space<vmem>>, %arg3: memref<1x64xf32, #tpu.memory_space<vmem>>, %arg4: memref<8x64xf32, #tpu.memory_space<vmem>>) attributes {dimension_semantics = [#tpu.dimension_semantics<parallel>], iteration_bounds = array<i64: 1>, scalar_prefetch = 0 : i64, scratch_operands = 0 : i64, tpu.core_type = #tpu.core_type<tc>, window_params = [{transform_indices = @transform_0, window_bounds = array<i64: 8, 64>}, {pipeline_mode = #tpu.pipeline_mode<synchronous>, transform_indices = @transform_1, window_bounds = array<i64: 1, 64>}, {pipeline_mode = #tpu.pipeline_mode<synchronous>, transform_indices = @transform_2, window_bounds = array<i64: 1, 64>}, {transform_indices = @transform_3, window_bounds = array<i64: 8, 64>}]} {
    %c8_i32 = arith.constant 8 : i32
    %0 = arith.muli %arg0, %c8_i32 : i32
    %1 = tpu.iota {dimensions = array<i32: 0>} : vector<8x64xi32>
    %2 = vector.broadcast %0 : i32 to vector<8x64xi32>
    %3 = arith.addi %2, %1 : vector<8x64xi32>
    %4 = arith.sitofp %3 : vector<8x64xi32> to vector<8x64xf32>
    %c0 = arith.constant 0 : index
    %c0_0 = arith.constant 0 : index
    %5 = vector.load %arg2[%c0, %c0_0] : memref<1x64xf32, #tpu.memory_space<vmem>>, vector<1x64xf32>
    %6 = vector.broadcast %5 : vector<1x64xf32> to vector<8x64xf32>
    %7 = arith.mulf %4, %6 : vector<8x64xf32>
    %c0_1 = arith.constant 0 : index
    %c0_2 = arith.constant 0 : index
    %8 = vector.load %arg3[%c0_1, %c0_2] : memref<1x64xf32, #tpu.memory_space<vmem>>, vector<1x64xf32>
    %9 = vector.broadcast %8 : vector<1x64xf32> to vector<8x64xf32>
    %10 = arith.addf %7, %9 : vector<8x64xf32>
    %11 = math.sin %10 : vector<8x64xf32>
    %c0_3 = arith.constant 0 : index
    %c0_4 = arith.constant 0 : index
    %12 = vector.load %arg1[%c0_3, %c0_4] : memref<8x64xf32, #tpu.memory_space<vmem>>, vector<8x64xf32>
    %13 = arith.addf %12, %11 : vector<8x64xf32>
    %c0_5 = arith.constant 0 : index
    %c0_6 = arith.constant 0 : index
    %14 = vector.load %arg4[%c0_5, %c0_6] : memref<8x64xf32, #tpu.memory_space<vmem>>, vector<8x64xf32>
    tpu.vector_store %arg4[%c0_5, %c0_6], %13 {strides = array<i32>} : memref<8x64xf32, #tpu.memory_space<vmem>>, vector<8x64xf32>,
    return
  }
  func.func @transform_0(%arg0: i32) -> (i32, i32) {
    %c0_i32 = arith.constant 0 : i32
    %c0_i32_0 = arith.constant 0 : i32
    return %arg0, %c0_i32 : i32, i32
  }
  func.func @transform_1(%arg0: i32) -> (i32, i32) {
    %c0_i32 = arith.constant 0 : i32
    %c0_i32_0 = arith.constant 0 : i32
    %c0_i32_1 = arith.constant 0 : i32
    return %c0_i32, %c0_i32_0 : i32, i32
  }
  func.func @transform_2(%arg0: i32) -> (i32, i32) {
    %c0_i32 = arith.constant 0 : i32
    %c0_i32_0 = arith.constant 0 : i32
    %c0_i32_1 = arith.constant 0 : i32
    return %c0_i32, %c0_i32_0 : i32, i32
  }
  func.func @transform_3(%arg0: i32) -> (i32, i32) {
    %c0_i32 = arith.constant 0 : i32
    %c0_i32_0 = arith.constant 0 : i32
    return %arg0, %c0_i32 : i32, i32
  }
}

</mosaic_0001>

<llo_original>
// kernel: positional_encoding_forward.1
$region0: #{positional_encoding_forward.1}
  #allocation0 [shape = 'u32[]', space=smem, size = 0x4, offset = 0x4, fixed_abs, tag = 'smem constant byte address 0x4 - core index']
  #allocation1 [shape = 'u32[144,128]{1,0:T(1,128)}', space=vmem, size = 0x12000, scoped, tag = 'internal scratch']
  %s0 = inlined_call_operand.vmem [shape: f32[8,64], index: 0, kind: input, shape index: {}, may-alias: {0,3}]
  %s1 = inlined_call_operand.vmem [shape: f32[1,64], index: 1, kind: input, shape index: {}]
  %s2 = inlined_call_operand.vmem [shape: f32[1,64], index: 2, kind: input, shape index: {}]
  %s3 = inlined_call_operand.vmem [shape: f32[8,64], index: 3, kind: output, shape index: {}, may-alias: {0,3}]
  %s4 = sld [smem:[#allocation0]]
  $region22: #{positional_encoding_forward.1} parent=0
    _
  %s6 = ssub.s32 1, %s4
  %s7 = scalar_select 0, %s6, %s4
  // Predicated region
  $region2: #{positional_encoding_forward.1} parent=0 // pred_check
    _
  $region3: #{positional_encoding_forward.1} parent=0 // pred_check_branch
    %9 = sbr.rel (0) target = $region5
  $region4: #{positional_encoding_forward.1} parent=0 // pred_region
    _
  $region5: #{positional_encoding_forward.1} parent=0 // pred_fallthru
    _
  // Predicated region
  $region6: #{positional_encoding_forward.1} parent=0 // pred_check
    _
  $region7: #{positional_encoding_forward.1} parent=0 // pred_check_branch
    %11 = sbr.rel (0) target = $region9
  $region8: #{positional_encoding_forward.1} parent=0 // pred_region
    _
  $region9: #{positional_encoding_forward.1} parent=0 // pred_fallthru
    _
  // Predicated region
  $region10: #{positional_encoding_forward.1} parent=0 // pred_check
    _
  $region11: #{positional_encoding_forward.1} parent=0 // pred_check_branch
    %13 = sbr.rel (0) target = $region13
  $region12: #{positional_encoding_forward.1} parent=0 // pred_region
    _
  $region13: #{positional_encoding_forward.1} parent=0 // pred_fallthru
    _
  %s14 = smul.u32 0, 8
  %v15 = vlaneseq
  %v16 = vshrl.u32 %v15, 7
  %v17 = vstv %s14
  %v18 = vadd.s32 %v17, %v16
  %v19 = vcvt.s32.f32 %v18
  %v20 = vld [vmem:[%s1] sm:$0x1]
  %v22 = vlaneseq
  %v23 = vshrl.u32 %v22, 7
  %v24 = vsub.s32 0, %v23
  %v25 = vrot.slane %v20, %v24
  %v27 = vmul.f32 %v19, %v25
  %v28 = vld [vmem:[%s2] sm:$0x1]
  %v30 = vlaneseq
  %v31 = vshrl.u32 %v30, 7
  %v32 = vsub.s32 0, %v31
  %v33 = vrot.slane %v28, %v32
  %v35 = vadd.f32 %v27, %v33
  %v36 = vand.u32 2147483647, %v35
  %vm37 = vcmp.le.f32.partialorder %v36, 0.7853982
  %vm38 = vcmp.lt.s32.totalorder %v35, 0
  %v39 = vand.u32 %v35, 2139095040
  %v40 = vshrl.u32 %v39, 23
  %v41 = vsub.s32 %v40, 127
  %v42 = vand.u32 2147483647, %v35
  %v43 = vand.u32 %v42, 8388607
  %v44 = vor.u32 %v43, 8388608
  %v45 = vsub.s32 0, %v44
  %v46 = vadd.s32 %v41, 1
  %vm47 = vcmp.gt.s32.totalorder %v46, 0
  %v48 = vsel %vm47, %v46, 0
  %v49 = vshrl.u32 %v48, 5
  %v50 = vand.u32 %v48, 31
  %v51 = vsub.s32 32, %v50
  %v52 = vshrl.u32 683565275, %v51
  %v53 = vshll.u32 683565275, %v50
  %v54 = vshrl.u32 2475754826, %v51
  %v55 = vor.u32 %v53, %v54
  %v56 = vshll.u32 2475754826, %v50
  %v57 = vshrl.u32 2131351028, %v51
  %v58 = vor.u32 %v56, %v57
  %v59 = vshll.u32 2131351028, %v50
  %v60 = vshrl.u32 2102212464, %v51
  %v61 = vor.u32 %v59, %v60
  %v62 = vshll.u32 2102212464, %v50
  %v63 = vshrl.u32 920167782, %v51
  %v64 = vor.u32 %v62, %v63
  %v65 = vshll.u32 920167782, %v50
  %v66 = vshrl.u32 1326507024, %v51
  %v67 = vor.u32 %v65, %v66
  %vm68 = vcmp.lt.s32.totalorder %v49, 1
  %vm69 = vcmp.lt.s32.totalorder %v49, 2
  %vm70 = vcmp.lt.s32.totalorder %v49, 3
  %vm71 = vcmp.lt.s32.totalorder %v49, 4
  %v72 = vsel %vm68, %v52, %v55
  %v73 = vsel %vm71, %v61, 2102212464
  %v74 = vsel %vm70, %v58, %v73
  %v75 = vsel %vm69, %v72, %v74
  %v76 = vsel %vm68, %v55, %v58
  %v77 = vsel %vm71, %v64, 920167782
  %v78 = vsel %vm70, %v61, %v77
  %v79 = vsel %vm69, %v76, %v78
  %v80 = vsel %vm68, %v58, %v61
  %v81 = vsel %vm71, %v67, 1326507024
  %v82 = vsel %vm70, %v64, %v81
  %v83 = vsel %vm69, %v80, %v82
  %v84 = vshll.u32 %v44, 8
  %v85 = vmul.u32.u64.compose %v84, %v83
  %v86 = vextract.low.u32 %v85
  %v87 = vextract.high.u32 %v85
  %v88 = vmul.u32.u64.compose %v84, %v79
  %v89 = vextract.low.u32 %v88
  %v90 = vextract.high.u32 %v88
  %v91 = vmul.u32 %v84, %v75
  %v92 = vadd.s32 %v87, %v89
  %vm93 = vc.u32 %v87, %v89
  %v94 = vadd.s32 %v90, 1
  %v95 = vsel %vm93, %v94, %v90
  %v96 = vadd.s32 %v91, %v95
  %v97 = vadd.s32 %v96, 536870912
  %v98 = vshrl.u32 %v97, 30
  %v99 = vshll.u32 %v98, 30
  %v100 = vsub.s32 %v96, %v99
  %vm101 = vcmp.lt.s32.totalorder %v100, 0
  %v102 = vsub.s32 0, %v100
  %v103 = vsel %vm101, %v102, %v100
  %v104 = vclz %v103
  %v105 = vsub.s32 %v104, 2
  %vm106 = vcmp.gt.s32.totalorder 0, %v105
  %v107 = vsel %vm106, 0, %v105
  %v108 = vsub.s32 32, %v107
  %v109 = vshll.u32 %v100, %v107
  %v110 = vshrl.u32 %v92, %v108
  %v111 = vor.u32 %v109, %v110
  %v112 = vsub.s32 4294967266, %v107
  %v113 = vadd.s32 %v112, 127
  %v114 = vshll.u32 %v113, 23
  %v115 = vor.u32 4788187, %v114
  %v116 = vand.u32 2147483647, %v115
  %v118 = vcvt.s32.f32 %v111
  %v119 = vmul.f32 %v118, %v116
  %v120 = vxor.u32 %v119, 2147483648
  %v121 = vsel %vm38, %v120, %v119
  %v122 = vsub.s32 4, %v98
  %v123 = vsel %vm38, %v122, %v98
  %v124 = vsel %vm37, %v35, %v121
  %v125 = vsel %vm37, 0, %v123
  %v126 = vcosq.f32.pop %v124
  %v127 = vsinq.f32.pop %v124
  %vm128 = vweird.f32 %v35
  %v129 = vadd.s32 %v125, 3
  %v130 = vand.u32 %v129, 3
  %vm131 = vcmp.lt.s32.totalorder %v130, 2
  %vm132 = vcmp.eq.s32.totalorder %v130, 0
  %v133 = vxor.u32 %v127, 2147483648
  %v134 = vsel %vm132, %v126, %v133
  %vm135 = vcmp.eq.s32.totalorder %v130, 2
  %v136 = vxor.u32 %v126, 2147483648
  %v137 = vsel %vm135, %v136, %v127
  %v138 = vsel %vm131, %v134, %v137
  %v139 = vsel %vm128, nan, %v138
  %v140 = vld [vmem:[%s0] sm:$0xff]
  %v141 = vadd.f32 %v140, %v139
  %vm142 = vcmask 523264
  %143 = vst.msk [vmem:[%s3] sm:$0xff] %vm142, %v141
  // Predicated region
  $region14: #{positional_encoding_forward.1} parent=0 // pred_check
    _
  $region15: #{positional_encoding_forward.1} parent=0 // pred_check_branch
    %145 = sbr.rel (0) target = $region17
  $region16: #{positional_encoding_forward.1} parent=0 // pred_region
    _
  $region17: #{positional_encoding_forward.1} parent=0 // pred_fallthru
    _
  // Predicated region
  $region18: #{positional_encoding_forward.1} parent=0 // pred_check
    _
  $region19: #{positional_encoding_forward.1} parent=0 // pred_check_branch
    %147 = sbr.rel (0) target = $region21
  $region20: #{positional_encoding_forward.1} parent=0 // pred_region
    _
  $region21: #{positional_encoding_forward.1} parent=0 // pred_fallthru
    _

</llo_original>
